<compile_context>
chip_gen: v5e
topology: v5e:2x2
jax: 0.10.0
libtpu: 0.0.40
codegen_flags: <defaults>
</compile_context>

<pallas_src>
import functools

import jax
import jax.numpy as jnp
from jax.experimental import pallas as pl
from jax.experimental.pallas import tpu as pltpu

LANE = 128  # TPU lane width


def lstm_fused_kernel(x_ref, wih_ref, whh_ref, b_ref, wfc_ref, bfc_ref,
                      out_ref, h_scratch, *, seq_len, batch):
    """Fused LSTM + FC, one invocation for the whole sequence.

    x_ref    : (S*B, F)   time-major flattened input, row = t*B + b
    wih_ref  : (F, 4H)    W_ih^T, gate-column order [i, f, o, g]
    whh_ref  : (H, 4H)    W_hh^T, same gate order
    b_ref    : (1, 4H)    b_ih + b_hh, same gate order
    wfc_ref  : (H, Tp)    W_fc^T zero-padded to Tp (multiple of 128 lanes)
    bfc_ref  : (1, Tp)    b_fc zero-padded
    out_ref  : (S*B, Tp)  lane-dense time-major output slab
    h_scratch: (S*B, H)   VMEM scratch collecting per-step hidden states
    """
    H = whh_ref.shape[0]

    # ---- 1. Input projection for ALL timesteps: one MXU call, bias added once.
    gates_x = (jnp.dot(x_ref[...], wih_ref[...],
                       preferred_element_type=jnp.float32)
               + b_ref[...])                                      # (S*B, 4H)

    # ---- 2. Serial recurrence: only h @ W_hh^T stays on the critical path.
    #         W_hh is loop-invariant; the fully unrolled loop keeps it staged.
    whh = whh_ref[...]                                            # (H, 4H)
    h = jnp.zeros((batch, H), jnp.float32)
    c = jnp.zeros((batch, H), jnp.float32)
    for t in range(seq_len):                 # fully unrolled (small S), static slices
        gates = gates_x[t * batch:(t + 1) * batch, :] + jnp.dot(
            h, whh, preferred_element_type=jnp.float32)           # (B, 4H)
        # Gate order [i, f, o, g]: one full-width sigmoid + one tanh per step.
        ifo = jax.nn.sigmoid(gates[:, :3 * H])                    # (B, 3H)
        g_g = jnp.tanh(gates[:, 3 * H:])                          # (B, H)
        i_g = ifo[:, 0 * H:1 * H]
        f_g = ifo[:, 1 * H:2 * H]
        o_g = ifo[:, 2 * H:3 * H]
        c = f_g * c + i_g * g_g
        h = o_g * jnp.tanh(c)
        # Per-step static store into VMEM scratch (idle vst slot, no concat).
        h_scratch[t * batch:(t + 1) * batch, :] = h

    # ---- 3. Deferred FC: single lane-dense matmul + single unmasked store.
    y = (jnp.dot(h_scratch[...], wfc_ref[...],
                 preferred_element_type=jnp.float32)
         + bfc_ref[...])                                          # (S*B, Tp)
    out_ref[...] = y.astype(out_ref.dtype)


def lstm_model_forward(x, params):
    """x: (B, S, F) float32. Returns (B, S, n_target), matching
    LSTMModel.forward (zero-initialized h0/c0, num_layers=1, batch_first)."""
    B, S, F = x.shape
    wih_t = params["wih_t"]     # (F, 4H)  gate order [i, f, o, g]
    whh_t = params["whh_t"]     # (H, 4H)
    b = params["b"]             # (1, 4H)  == (b_ih + b_hh), permuted
    wfc_t = params["wfc_t"]     # (H, T)
    bfc = params["bfc"]         # (1, T)
    H = whh_t.shape[0]
    T = wfc_t.shape[1]

    # Lane-dense FC: zero-pad output columns to a multiple of 128 lanes.
    Tp = max(LANE, ((T + LANE - 1) // LANE) * LANE)
    wfc_pad = jnp.zeros((H, Tp), jnp.float32).at[:, :T].set(wfc_t)
    bfc_pad = jnp.zeros((1, Tp), jnp.float32).at[:, :T].set(bfc)

    # Time-major flat layout (row = t*B + b), done in XLA (free layout plumbing).
    x_flat = jnp.transpose(x, (1, 0, 2)).reshape(S * B, F)

    kernel = functools.partial(lstm_fused_kernel, seq_len=S, batch=B)

    # Everything resident in VMEM; full-extent blocks; single grid step so
    # weights are loaded exactly once and there is no per-step DMA.
    # NOTE: at B=2 the recurrent matmul feeds only 2 rows into the MXU; the
    # real lever on v6e/v7x is packing more independent sequences per call
    # (and on v7x adding a "parallel" grid axis across sequence groups).
    y_flat = pl.pallas_call(
        kernel,
        out_shape=jax.ShapeDtypeStruct((S * B, Tp), jnp.float32),
        grid=(1,),
        in_specs=[
            pl.BlockSpec((S * B, F), lambda i: (0, 0)),     # x (time-major slab)
            pl.BlockSpec((F, 4 * H), lambda i: (0, 0)),     # W_ih^T
            pl.BlockSpec((H, 4 * H), lambda i: (0, 0)),     # W_hh^T
            pl.BlockSpec((1, 4 * H), lambda i: (0, 0)),     # fused bias
            pl.BlockSpec((H, Tp), lambda i: (0, 0)),        # W_fc^T (padded)
            pl.BlockSpec((1, Tp), lambda i: (0, 0)),        # b_fc (padded)
        ],
        out_specs=pl.BlockSpec((S * B, Tp), lambda i: (0, 0)),
        scratch_shapes=[pltpu.VMEM((S * B, H), jnp.float32)],
        compiler_params=pltpu.CompilerParams(
            dimension_semantics=("arbitrary",),
        ),
    )(x_flat, wih_t, whh_t, b, wfc_pad, bfc_pad)

    # (S*B, Tp) -> drop lane padding -> (B, S, T)
    return y_flat[:, :T].reshape(S, B, T).transpose(1, 0, 2)


def make_params(key, n_features, hidden_size, n_target):
    """Deterministic init mimicking PyTorch's U(-1/sqrt(H), 1/sqrt(H)).

    PyTorch gate order along the 4H axis is [i, f, g, o]; the kernel uses
    [i, f, o, g] so one sigmoid covers the first 3H columns. The permutation
    is applied consistently to W_ih, W_hh and the fused bias (pure relabel,
    mathematically identical to the PyTorch LSTM)."""
    H = hidden_size
    k = 1.0 / jnp.sqrt(jnp.float32(H))
    keys = jax.random.split(key, 6)
    u = lambda kk, shape: jax.random.uniform(kk, shape, jnp.float32, -k, k)
    w_ih = u(keys[0], (4 * H, n_features))   # PyTorch layout (4H, F), [i,f,g,o]
    w_hh = u(keys[1], (4 * H, H))            # (4H, H)
    b_ih = u(keys[2], (4 * H,))
    b_hh = u(keys[3], (4 * H,))
    w_fc = u(keys[4], (n_target, H))         # (T, H)
    b_fc = u(keys[5], (n_target,))

    # Row permutation [i, f, g, o] -> [i, f, o, g].
    perm = jnp.concatenate([
        jnp.arange(0 * H, 1 * H),   # i
        jnp.arange(1 * H, 2 * H),   # f
        jnp.arange(3 * H, 4 * H),   # o
        jnp.arange(2 * H, 3 * H),   # g
    ])
    return {
        "wih_t": w_ih[perm].T,                         # (F, 4H)
        "whh_t": w_hh[perm].T,                         # (H, 4H)
        "b": (b_ih + b_hh)[perm][None, :],             # (1, 4H)
        "wfc_t": w_fc.T,                               # (H, T)
        "bfc": b_fc[None, :],                          # (1, T)
    }


def reference_forward(x, params):
    """Pure-JAX reference (lax.scan), using the same [i, f, o, g] gate layout."""
    B, S, F = x.shape
    H = params["whh_t"].shape[0]
    h0 = jnp.zeros((B, H), jnp.float32)
    c0 = jnp.zeros((B, H), jnp.float32)

    def step(carry, x_t):
        h, c = carry
        gates = x_t @ params["wih_t"] + h @ params["whh_t"] + params["b"]
        i_g = jax.nn.sigmoid(gates[:, 0 * H:1 * H])
        f_g = jax.nn.sigmoid(gates[:, 1 * H:2 * H])
        o_g = jax.nn.sigmoid(gates[:, 2 * H:3 * H])
        g_g = jnp.tanh(gates[:, 3 * H:4 * H])
        c = f_g * c + i_g * g_g
        h = o_g * jnp.tanh(c)
        y = h @ params["wfc_t"] + params["bfc"]
        return (h, c), y

    _, ys = jax.lax.scan(step, (h0, c0), jnp.swapaxes(x, 0, 1))  # (S, B, T)
    return jnp.swapaxes(ys, 0, 1)


if __name__ == "__main__":
    # Small shapes consistent with the module: batch=2, seq=8, features=4,
    # hidden=32, n_target=4 (node_count is unused in forward).
    B, S, F, H, T = 2, 8, 4, 32, 4

    key = jax.random.PRNGKey(0)
    kx, kp = jax.random.split(key)
    x = jax.random.normal(kx, (B, S, F), dtype=jnp.float32)
    params = make_params(kp, n_features=F, hidden_size=H, n_target=T)

    out = jax.block_until_ready(lstm_model_forward(x, params))
    ref = jax.block_until_ready(reference_forward(x, params))

    assert out.shape == (B, S, T)
    assert jnp.allclose(out, ref, atol=1e-5, rtol=1e-5), "mismatch vs. reference"

    print("KERNEL_OK")
</pallas_src>

<mosaic_0001>
module attributes {stable_mosaic.version = 11 : i64} {
  func.func @lstm_fused_kernel(%arg0: i32, %arg1: memref<16x4xf32, #tpu.memory_space<vmem>>, %arg2: memref<4x128xf32, #tpu.memory_space<vmem>>, %arg3: memref<32x128xf32, #tpu.memory_space<vmem>>, %arg4: memref<1x128xf32, #tpu.memory_space<vmem>>, %arg5: memref<32x128xf32, #tpu.memory_space<vmem>>, %arg6: memref<1x128xf32, #tpu.memory_space<vmem>>, %arg7: memref<16x128xf32, #tpu.memory_space<vmem>>, %arg8: memref<16x32xf32, #tpu.memory_space<vmem>>) attributes {dimension_semantics = [#tpu.dimension_semantics<arbitrary>], iteration_bounds = array<i64: 1>, scalar_prefetch = 0 : i64, scratch_operands = 1 : i64, tpu.core_type = #tpu.core_type<tc>, window_params = [{pipeline_mode = #tpu.pipeline_mode<synchronous>, transform_indices = @transform_0, window_bounds = array<i64: 16, 4>}, {pipeline_mode = #tpu.pipeline_mode<synchronous>, transform_indices = @transform_1, window_bounds = array<i64: 4, 128>}, {pipeline_mode = #tpu.pipeline_mode<synchronous>, transform_indices = @transform_2, window_bounds = array<i64: 32, 128>}, {pipeline_mode = #tpu.pipeline_mode<synchronous>, transform_indices = @transform_3, window_bounds = array<i64: 1, 128>}, {pipeline_mode = #tpu.pipeline_mode<synchronous>, transform_indices = @transform_4, window_bounds = array<i64: 32, 128>}, {pipeline_mode = #tpu.pipeline_mode<synchronous>, transform_indices = @transform_5, window_bounds = array<i64: 1, 128>}, {pipeline_mode = #tpu.pipeline_mode<synchronous>, transform_indices = @transform_6, window_bounds = array<i64: 16, 128>}]} {
    %c0 = arith.constant 0 : index
    %c0_0 = arith.constant 0 : index
    %0 = vector.load %arg1[%c0, %c0_0] : memref<16x4xf32, #tpu.memory_space<vmem>>, vector<16x4xf32>
    %c0_1 = arith.constant 0 : index
    %c0_2 = arith.constant 0 : index
    %1 = vector.load %arg2[%c0_1, %c0_2] : memref<4x128xf32, #tpu.memory_space<vmem>>, vector<4x128xf32>
    %cst = arith.constant dense<0.000000e+00> : vector<16x128xf32>
    %2 = tpu.matmul %0, %1, %cst {dimension_numbers = #tpu.dot_dimension_numbers<[1], [0], [0], [1], [0, 0, 1, 1], [], []>} : vector<16x4xf32>, vector<4x128xf32>, vector<16x128xf32> -> vector<16x128xf32>
    %c0_3 = arith.constant 0 : index
    %c0_4 = arith.constant 0 : index
    %3 = vector.load %arg4[%c0_3, %c0_4] : memref<1x128xf32, #tpu.memory_space<vmem>>, vector<1x128xf32>
    %4 = vector.broadcast %3 : vector<1x128xf32> to vector<16x128xf32>
    %5 = arith.addf %2, %4 : vector<16x128xf32>
    %c0_5 = arith.constant 0 : index
    %c0_6 = arith.constant 0 : index
    %6 = vector.load %arg3[%c0_5, %c0_6] : memref<32x128xf32, #tpu.memory_space<vmem>>, vector<32x128xf32>
    %cst_7 = arith.constant 0.000000e+00 : f32
    %7 = vector.broadcast %cst_7 : f32 to vector<2x32xf32>
    %cst_8 = arith.constant 0.000000e+00 : f32
    %8 = vector.broadcast %cst_8 : f32 to vector<2x32xf32>
    %9 = vector.extract_strided_slice %5 {offsets = [0, 0], sizes = [2, 128], strides = [1, 1]} : vector<16x128xf32> to vector<2x128xf32>
    %cst_9 = arith.constant dense<0.000000e+00> : vector<2x128xf32>
    %10 = tpu.matmul %7, %6, %cst_9 {dimension_numbers = #tpu.dot_dimension_numbers<[1], [0], [0], [1], [0, 0, 1, 1], [], []>} : vector<2x32xf32>, vector<32x128xf32>, vector<2x128xf32> -> vector<2x128xf32>
    %11 = arith.addf %9, %10 : vector<2x128xf32>
    %12 = vector.extract_strided_slice %11 {offsets = [0, 0], sizes = [2, 96], strides = [1, 1]} : vector<2x128xf32> to vector<2x96xf32>
    %13 = arith.negf %12 : vector<2x96xf32>
    %14 = math.exp %13 : vector<2x96xf32>
    %cst_10 = arith.constant 1.000000e+00 : f32
    %15 = vector.broadcast %cst_10 : f32 to vector<2x96xf32>
    %16 = arith.addf %15, %14 : vector<2x96xf32>
    %17 = arith.divf %15, %16 : vector<2x96xf32>
    %18 = vector.extract_strided_slice %11 {offsets = [0, 96], sizes = [2, 32], strides = [1, 1]} : vector<2x128xf32> to vector<2x32xf32>
    %19 = math.tanh %18 : vector<2x32xf32>
    %20 = vector.extract_strided_slice %17 {offsets = [0, 0], sizes = [2, 32], strides = [1, 1]} : vector<2x96xf32> to vector<2x32xf32>
    %21 = vector.extract_strided_slice %17 {offsets = [0, 32], sizes = [2, 32], strides = [1, 1]} : vector<2x96xf32> to vector<2x32xf32>
    %22 = vector.extract_strided_slice %17 {offsets = [0, 64], sizes = [2, 32], strides = [1, 1]} : vector<2x96xf32> to vector<2x32xf32>
    %23 = arith.mulf %21, %8 : vector<2x32xf32>
    %24 = arith.mulf %20, %19 : vector<2x32xf32>
    %25 = arith.addf %23, %24 : vector<2x32xf32>
    %26 = math.tanh %25 : vector<2x32xf32>
    %27 = arith.mulf %22, %26 : vector<2x32xf32>
    %c0_11 = arith.constant 0 : index
    %c0_12 = arith.constant 0 : index
    %28 = vector.load %arg8[%c0_11, %c0_12] : memref<16x32xf32, #tpu.memory_space<vmem>>, vector<2x32xf32>
    tpu.vector_store %arg8[%c0_11, %c0_12], %27 {strides = array<i32>} : memref<16x32xf32, #tpu.memory_space<vmem>>, vector<2x32xf32>,
    %29 = vector.extract_strided_slice %5 {offsets = [2, 0], sizes = [2, 128], strides = [1, 1]} : vector<16x128xf32> to vector<2x128xf32>
    %cst_13 = arith.constant dense<0.000000e+00> : vector<2x128xf32>
    %30 = tpu.matmul %27, %6, %cst_13 {dimension_numbers = #tpu.dot_dimension_numbers<[1], [0], [0], [1], [0, 0, 1, 1], [], []>} : vector<2x32xf32>, vector<32x128xf32>, vector<2x128xf32> -> vector<2x128xf32>
    %31 = arith.addf %29, %30 : vector<2x128xf32>
    %32 = vector.extract_strided_slice %31 {offsets = [0, 0], sizes = [2, 96], strides = [1, 1]} : vector<2x128xf32> to vector<2x96xf32>
    %33 = arith.negf %32 : vector<2x96xf32>
    %34 = math.exp %33 : vector<2x96xf32>
    %cst_14 = arith.constant 1.000000e+00 : f32
    %35 = vector.broadcast %cst_14 : f32 to vector<2x96xf32>
    %36 = arith.addf %35, %34 : vector<2x96xf32>
    %37 = arith.divf %35, %36 : vector<2x96xf32>
    %38 = vector.extract_strided_slice %31 {offsets = [0, 96], sizes = [2, 32], strides = [1, 1]} : vector<2x128xf32> to vector<2x32xf32>
    %39 = math.tanh %38 : vector<2x32xf32>
    %40 = vector.extract_strided_slice %37 {offsets = [0, 0], sizes = [2, 32], strides = [1, 1]} : vector<2x96xf32> to vector<2x32xf32>
    %41 = vector.extract_strided_slice %37 {offsets = [0, 32], sizes = [2, 32], strides = [1, 1]} : vector<2x96xf32> to vector<2x32xf32>
    %42 = vector.extract_strided_slice %37 {offsets = [0, 64], sizes = [2, 32], strides = [1, 1]} : vector<2x96xf32> to vector<2x32xf32>
    %43 = arith.mulf %41, %25 : vector<2x32xf32>
    %44 = arith.mulf %40, %39 : vector<2x32xf32>
    %45 = arith.addf %43, %44 : vector<2x32xf32>
    %46 = math.tanh %45 : vector<2x32xf32>
    %47 = arith.mulf %42, %46 : vector<2x32xf32>
    %c2 = arith.constant 2 : index
    %c0_15 = arith.constant 0 : index
    %48 = vector.load %arg8[%c2, %c0_15] : memref<16x32xf32, #tpu.memory_space<vmem>>, vector<2x32xf32>
    tpu.vector_store %arg8[%c2, %c0_15], %47 {strides = array<i32>} : memref<16x32xf32, #tpu.memory_space<vmem>>, vector<2x32xf32>,
    %49 = vector.extract_strided_slice %5 {offsets = [4, 0], sizes = [2, 128], strides = [1, 1]} : vector<16x128xf32> to vector<2x128xf32>
    %cst_16 = arith.constant dense<0.000000e+00> : vector<2x128xf32>
    %50 = tpu.matmul %47, %6, %cst_16 {dimension_numbers = #tpu.dot_dimension_numbers<[1], [0], [0], [1], [0, 0, 1, 1], [], []>} : vector<2x32xf32>, vector<32x128xf32>, vector<2x128xf32> -> vector<2x128xf32>
    %51 = arith.addf %49, %50 : vector<2x128xf32>
    %52 = vector.extract_strided_slice %51 {offsets = [0, 0], sizes = [2, 96], strides = [1, 1]} : vector<2x128xf32> to vector<2x96xf32>
    %53 = arith.negf %52 : vector<2x96xf32>
    %54 = math.exp %53 : vector<2x96xf32>
    %cst_17 = arith.constant 1.000000e+00 : f32
    %55 = vector.broadcast %cst_17 : f32 to vector<2x96xf32>
    %56 = arith.addf %55, %54 : vector<2x96xf32>
    %57 = arith.divf %55, %56 : vector<2x96xf32>
    %58 = vector.extract_strided_slice %51 {offsets = [0, 96], sizes = [2, 32], strides = [1, 1]} : vector<2x128xf32> to vector<2x32xf32>
    %59 = math.tanh %58 : vector<2x32xf32>
    %60 = vector.extract_strided_slice %57 {offsets = [0, 0], sizes = [2, 32], strides = [1, 1]} : vector<2x96xf32> to vector<2x32xf32>
    %61 = vector.extract_strided_slice %57 {offsets = [0, 32], sizes = [2, 32], strides = [1, 1]} : vector<2x96xf32> to vector<2x32xf32>
    %62 = vector.extract_strided_slice %57 {offsets = [0, 64], sizes = [2, 32], strides = [1, 1]} : vector<2x96xf32> to vector<2x32xf32>
    %63 = arith.mulf %61, %45 : vector<2x32xf32>
    %64 = arith.mulf %60, %59 : vector<2x32xf32>
    %65 = arith.addf %63, %64 : vector<2x32xf32>
    %66 = math.tanh %65 : vector<2x32xf32>
    %67 = arith.mulf %62, %66 : vector<2x32xf32>
    %c4 = arith.constant 4 : index
    %c0_18 = arith.constant 0 : index
    %68 = vector.load %arg8[%c4, %c0_18] : memref<16x32xf32, #tpu.memory_space<vmem>>, vector<2x32xf32>
    tpu.vector_store %arg8[%c4, %c0_18], %67 {strides = array<i32>} : memref<16x32xf32, #tpu.memory_space<vmem>>, vector<2x32xf32>,
    %69 = vector.extract_strided_slice %5 {offsets = [6, 0], sizes = [2, 128], strides = [1, 1]} : vector<16x128xf32> to vector<2x128xf32>
    %cst_19 = arith.constant dense<0.000000e+00> : vector<2x128xf32>
    %70 = tpu.matmul %67, %6, %cst_19 {dimension_numbers = #tpu.dot_dimension_numbers<[1], [0], [0], [1], [0, 0, 1, 1], [], []>} : vector<2x32xf32>, vector<32x128xf32>, vector<2x128xf32> -> vector<2x128xf32>
    %71 = arith.addf %69, %70 : vector<2x128xf32>
    %72 = vector.extract_strided_slice %71 {offsets = [0, 0], sizes = [2, 96], strides = [1, 1]} : vector<2x128xf32> to vector<2x96xf32>
    %73 = arith.negf %72 : vector<2x96xf32>
    %74 = math.exp %73 : vector<2x96xf32>
    %cst_20 = arith.constant 1.000000e+00 : f32
    %75 = vector.broadcast %cst_20 : f32 to vector<2x96xf32>
    %76 = arith.addf %75, %74 : vector<2x96xf32>
    %77 = arith.divf %75, %76 : vector<2x96xf32>
    %78 = vector.extract_strided_slice %71 {offsets = [0, 96], sizes = [2, 32], strides = [1, 1]} : vector<2x128xf32> to vector<2x32xf32>
    %79 = math.tanh %78 : vector<2x32xf32>
    %80 = vector.extract_strided_slice %77 {offsets = [0, 0], sizes = [2, 32], strides = [1, 1]} : vector<2x96xf32> to vector<2x32xf32>
    %81 = vector.extract_strided_slice %77 {offsets = [0, 32], sizes = [2, 32], strides = [1, 1]} : vector<2x96xf32> to vector<2x32xf32>
    %82 = vector.extract_strided_slice %77 {offsets = [0, 64], sizes = [2, 32], strides = [1, 1]} : vector<2x96xf32> to vector<2x32xf32>
    %83 = arith.mulf %81, %65 : vector<2x32xf32>
    %84 = arith.mulf %80, %79 : vector<2x32xf32>
    %85 = arith.addf %83, %84 : vector<2x32xf32>
    %86 = math.tanh %85 : vector<2x32xf32>
    %87 = arith.mulf %82, %86 : vector<2x32xf32>
    %c6 = arith.constant 6 : index
    %c0_21 = arith.constant 0 : index
    %88 = vector.load %arg8[%c6, %c0_21] : memref<16x32xf32, #tpu.memory_space<vmem>>, vector<2x32xf32>
    tpu.vector_store %arg8[%c6, %c0_21], %87 {strides = array<i32>} : memref<16x32xf32, #tpu.memory_space<vmem>>, vector<2x32xf32>,
    %89 = vector.extract_strided_slice %5 {offsets = [8, 0], sizes = [2, 128], strides = [1, 1]} : vector<16x128xf32> to vector<2x128xf32>
    %cst_22 = arith.constant dense<0.000000e+00> : vector<2x128xf32>
    %90 = tpu.matmul %87, %6, %cst_22 {dimension_numbers = #tpu.dot_dimension_numbers<[1], [0], [0], [1], [0, 0, 1, 1], [], []>} : vector<2x32xf32>, vector<32x128xf32>, vector<2x128xf32> -> vector<2x128xf32>
    %91 = arith.addf %89, %90 : vector<2x128xf32>
    %92 = vector.extract_strided_slice %91 {offsets = [0, 0], sizes = [2, 96], strides = [1, 1]} : vector<2x128xf32> to vector<2x96xf32>
    %93 = arith.negf %92 : vector<2x96xf32>
    %94 = math.exp %93 : vector<2x96xf32>
    %cst_23 = arith.constant 1.000000e+00 : f32
    %95 = vector.broadcast %cst_23 : f32 to vector<2x96xf32>
    %96 = arith.addf %95, %94 : vector<2x96xf32>
    %97 = arith.divf %95, %96 : vector<2x96xf32>
    %98 = vector.extract_strided_slice %91 {offsets = [0, 96], sizes = [2, 32], strides = [1, 1]} : vector<2x128xf32> to vector<2x32xf32>
    %99 = math.tanh %98 : vector<2x32xf32>
    %100 = vector.extract_strided_slice %97 {offsets = [0, 0], sizes = [2, 32], strides = [1, 1]} : vector<2x96xf32> to vector<2x32xf32>
    %101 = vector.extract_strided_slice %97 {offsets = [0, 32], sizes = [2, 32], strides = [1, 1]} : vector<2x96xf32> to vector<2x32xf32>
    %102 = vector.extract_strided_slice %97 {offsets = [0, 64], sizes = [2, 32], strides = [1, 1]} : vector<2x96xf32> to vector<2x32xf32>
    %103 = arith.mulf %101, %85 : vector<2x32xf32>
    %104 = arith.mulf %100, %99 : vector<2x32xf32>
    %105 = arith.addf %103, %104 : vector<2x32xf32>
    %106 = math.tanh %105 : vector<2x32xf32>
    %107 = arith.mulf %102, %106 : vector<2x32xf32>
    %c8 = arith.constant 8 : index
    %c0_24 = arith.constant 0 : index
    %108 = vector.load %arg8[%c8, %c0_24] : memref<16x32xf32, #tpu.memory_space<vmem>>, vector<2x32xf32>
    tpu.vector_store %arg8[%c8, %c0_24], %107 {strides = array<i32>} : memref<16x32xf32, #tpu.memory_space<vmem>>, vector<2x32xf32>,
    %109 = vector.extract_strided_slice %5 {offsets = [10, 0], sizes = [2, 128], strides = [1, 1]} : vector<16x128xf32> to vector<2x128xf32>
    %cst_25 = arith.constant dense<0.000000e+00> : vector<2x128xf32>
    %110 = tpu.matmul %107, %6, %cst_25 {dimension_numbers = #tpu.dot_dimension_numbers<[1], [0], [0], [1], [0, 0, 1, 1], [], []>} : vector<2x32xf32>, vector<32x128xf32>, vector<2x128xf32> -> vector<2x128xf32>
    %111 = arith.addf %109, %110 : vector<2x128xf32>
    %112 = vector.extract_strided_slice %111 {offsets = [0, 0], sizes = [2, 96], strides = [1, 1]} : vector<2x128xf32> to vector<2x96xf32>
    %113 = arith.negf %112 : vector<2x96xf32>
    %114 = math.exp %113 : vector<2x96xf32>
    %cst_26 = arith.constant 1.000000e+00 : f32
    %115 = vector.broadcast %cst_26 : f32 to vector<2x96xf32>
    %116 = arith.addf %115, %114 : vector<2x96xf32>
    %117 = arith.divf %115, %116 : vector<2x96xf32>
    %118 = vector.extract_strided_slice %111 {offsets = [0, 96], sizes = [2, 32], strides = [1, 1]} : vector<2x128xf32> to vector<2x32xf32>
    %119 = math.tanh %118 : vector<2x32xf32>
    %120 = vector.extract_strided_slice %117 {offsets = [0, 0], sizes = [2, 32], strides = [1, 1]} : vector<2x96xf32> to vector<2x32xf32>
    %121 = vector.extract_strided_slice %117 {offsets = [0, 32], sizes = [2, 32], strides = [1, 1]} : vector<2x96xf32> to vector<2x32xf32>
    %122 = vector.extract_strided_slice %117 {offsets = [0, 64], sizes = [2, 32], strides = [1, 1]} : vector<2x96xf32> to vector<2x32xf32>
    %123 = arith.mulf %121, %105 : vector<2x32xf32>
    %124 = arith.mulf %120, %119 : vector<2x32xf32>
    %125 = arith.addf %123, %124 : vector<2x32xf32>
    %126 = math.tanh %125 : vector<2x32xf32>
    %127 = arith.mulf %122, %126 : vector<2x32xf32>
    %c10 = arith.constant 10 : index
    %c0_27 = arith.constant 0 : index
    %128 = vector.load %arg8[%c10, %c0_27] : memref<16x32xf32, #tpu.memory_space<vmem>>, vector<2x32xf32>
    tpu.vector_store %arg8[%c10, %c0_27], %127 {strides = array<i32>} : memref<16x32xf32, #tpu.memory_space<vmem>>, vector<2x32xf32>,
    %129 = vector.extract_strided_slice %5 {offsets = [12, 0], sizes = [2, 128], strides = [1, 1]} : vector<16x128xf32> to vector<2x128xf32>
    %cst_28 = arith.constant dense<0.000000e+00> : vector<2x128xf32>
    %130 = tpu.matmul %127, %6, %cst_28 {dimension_numbers = #tpu.dot_dimension_numbers<[1], [0], [0], [1], [0, 0, 1, 1], [], []>} : vector<2x32xf32>, vector<32x128xf32>, vector<2x128xf32> -> vector<2x128xf32>
    %131 = arith.addf %129, %130 : vector<2x128xf32>
    %132 = vector.extract_strided_slice %131 {offsets = [0, 0], sizes = [2, 96], strides = [1, 1]} : vector<2x128xf32> to vector<2x96xf32>
    %133 = arith.negf %132 : vector<2x96xf32>
    %134 = math.exp %133 : vector<2x96xf32>
    %cst_29 = arith.constant 1.000000e+00 : f32
    %135 = vector.broadcast %cst_29 : f32 to vector<2x96xf32>
    %136 = arith.addf %135, %134 : vector<2x96xf32>
    %137 = arith.divf %135, %136 : vector<2x96xf32>
    %138 = vector.extract_strided_slice %131 {offsets = [0, 96], sizes = [2, 32], strides = [1, 1]} : vector<2x128xf32> to vector<2x32xf32>
    %139 = math.tanh %138 : vector<2x32xf32>
    %140 = vector.extract_strided_slice %137 {offsets = [0, 0], sizes = [2, 32], strides = [1, 1]} : vector<2x96xf32> to vector<2x32xf32>
    %141 = vector.extract_strided_slice %137 {offsets = [0, 32], sizes = [2, 32], strides = [1, 1]} : vector<2x96xf32> to vector<2x32xf32>
    %142 = vector.extract_strided_slice %137 {offsets = [0, 64], sizes = [2, 32], strides = [1, 1]} : vector<2x96xf32> to vector<2x32xf32>
    %143 = arith.mulf %141, %125 : vector<2x32xf32>
    %144 = arith.mulf %140, %139 : vector<2x32xf32>
    %145 = arith.addf %143, %144 : vector<2x32xf32>
    %146 = math.tanh %145 : vector<2x32xf32>
    %147 = arith.mulf %142, %146 : vector<2x32xf32>
    %c12 = arith.constant 12 : index
    %c0_30 = arith.constant 0 : index
    %148 = vector.load %arg8[%c12, %c0_30] : memref<16x32xf32, #tpu.memory_space<vmem>>, vector<2x32xf32>
    tpu.vector_store %arg8[%c12, %c0_30], %147 {strides = array<i32>} : memref<16x32xf32, #tpu.memory_space<vmem>>, vector<2x32xf32>,
    %149 = vector.extract_strided_slice %5 {offsets = [14, 0], sizes = [2, 128], strides = [1, 1]} : vector<16x128xf32> to vector<2x128xf32>
    %cst_31 = arith.constant dense<0.000000e+00> : vector<2x128xf32>
    %150 = tpu.matmul %147, %6, %cst_31 {dimension_numbers = #tpu.dot_dimension_numbers<[1], [0], [0], [1], [0, 0, 1, 1], [], []>} : vector<2x32xf32>, vector<32x128xf32>, vector<2x128xf32> -> vector<2x128xf32>
    %151 = arith.addf %149, %150 : vector<2x128xf32>
    %152 = vector.extract_strided_slice %151 {offsets = [0, 0], sizes = [2, 96], strides = [1, 1]} : vector<2x128xf32> to vector<2x96xf32>
    %153 = arith.negf %152 : vector<2x96xf32>
    %154 = math.exp %153 : vector<2x96xf32>
    %cst_32 = arith.constant 1.000000e+00 : f32
    %155 = vector.broadcast %cst_32 : f32 to vector<2x96xf32>
    %156 = arith.addf %155, %154 : vector<2x96xf32>
    %157 = arith.divf %155, %156 : vector<2x96xf32>
    %158 = vector.extract_strided_slice %151 {offsets = [0, 96], sizes = [2, 32], strides = [1, 1]} : vector<2x128xf32> to vector<2x32xf32>
    %159 = math.tanh %158 : vector<2x32xf32>
    %160 = vector.extract_strided_slice %157 {offsets = [0, 0], sizes = [2, 32], strides = [1, 1]} : vector<2x96xf32> to vector<2x32xf32>
    %161 = vector.extract_strided_slice %157 {offsets = [0, 32], sizes = [2, 32], strides = [1, 1]} : vector<2x96xf32> to vector<2x32xf32>
    %162 = vector.extract_strided_slice %157 {offsets = [0, 64], sizes = [2, 32], strides = [1, 1]} : vector<2x96xf32> to vector<2x32xf32>
    %163 = arith.mulf %161, %145 : vector<2x32xf32>
    %164 = arith.mulf %160, %159 : vector<2x32xf32>
    %165 = arith.addf %163, %164 : vector<2x32xf32>
    %166 = math.tanh %165 : vector<2x32xf32>
    %167 = arith.mulf %162, %166 : vector<2x32xf32>
    %c14 = arith.constant 14 : index
    %c0_33 = arith.constant 0 : index
    %168 = vector.load %arg8[%c14, %c0_33] : memref<16x32xf32, #tpu.memory_space<vmem>>, vector<2x32xf32>
    tpu.vector_store %arg8[%c14, %c0_33], %167 {strides = array<i32>} : memref<16x32xf32, #tpu.memory_space<vmem>>, vector<2x32xf32>,
    %c0_34 = arith.constant 0 : index
    %c0_35 = arith.constant 0 : index
    %169 = vector.load %arg8[%c0_34, %c0_35] : memref<16x32xf32, #tpu.memory_space<vmem>>, vector<16x32xf32>
    %c0_36 = arith.constant 0 : index
    %c0_37 = arith.constant 0 : index
    %170 = vector.load %arg5[%c0_36, %c0_37] : memref<32x128xf32, #tpu.memory_space<vmem>>, vector<32x128xf32>
    %cst_38 = arith.constant dense<0.000000e+00> : vector<16x128xf32>
    %171 = tpu.matmul %169, %170, %cst_38 {dimension_numbers = #tpu.dot_dimension_numbers<[1], [0], [0], [1], [0, 0, 1, 1], [], []>} : vector<16x32xf32>, vector<32x128xf32>, vector<16x128xf32> -> vector<16x128xf32>
    %c0_39 = arith.constant 0 : index
    %c0_40 = arith.constant 0 : index
    %172 = vector.load %arg6[%c0_39, %c0_40] : memref<1x128xf32, #tpu.memory_space<vmem>>, vector<1x128xf32>
    %173 = vector.broadcast %172 : vector<1x128xf32> to vector<16x128xf32>
    %174 = arith.addf %171, %173 : vector<16x128xf32>
    %c0_41 = arith.constant 0 : index
    %c0_42 = arith.constant 0 : index
    %175 = vector.load %arg7[%c0_41, %c0_42] : memref<16x128xf32, #tpu.memory_space<vmem>>, vector<16x128xf32>
    tpu.vector_store %arg7[%c0_41, %c0_42], %174 {strides = array<i32>} : memref<16x128xf32, #tpu.memory_space<vmem>>, vector<16x128xf32>,
    return
  }
  func.func @transform_0(%arg0: i32) -> (i32, i32) {
    %c0_i32 = arith.constant 0 : i32
    %c0_i32_0 = arith.constant 0 : i32
    %c0_i32_1 = arith.constant 0 : i32
    return %c0_i32, %c0_i32_0 : i32, i32
  }
  func.func @transform_1(%arg0: i32) -> (i32, i32) {
    %c0_i32 = arith.constant 0 : i32
    %c0_i32_0 = arith.constant 0 : i32
    %c0_i32_1 = arith.constant 0 : i32
    return %c0_i32, %c0_i32_0 : i32, i32
  }
  func.func @transform_2(%arg0: i32) -> (i32, i32) {
    %c0_i32 = arith.constant 0 : i32
    %c0_i32_0 = arith.constant 0 : i32
    %c0_i32_1 = arith.constant 0 : i32
    return %c0_i32, %c0_i32_0 : i32, i32
  }
  func.func @transform_3(%arg0: i32) -> (i32, i32) {
    %c0_i32 = arith.constant 0 : i32
    %c0_i32_0 = arith.constant 0 : i32
    %c0_i32_1 = arith.constant 0 : i32
    return %c0_i32, %c0_i32_0 : i32, i32
  }
  func.func @transform_4(%arg0: i32) -> (i32, i32) {
    %c0_i32 = arith.constant 0 : i32
    %c0_i32_0 = arith.constant 0 : i32
    %c0_i32_1 = arith.constant 0 : i32
    return %c0_i32, %c0_i32_0 : i32, i32
  }
  func.func @transform_5(%arg0: i32) -> (i32, i32) {
    %c0_i32 = arith.constant 0 : i32
    %c0_i32_0 = arith.constant 0 : i32
    %c0_i32_1 = arith.constant 0 : i32
    return %c0_i32, %c0_i32_0 : i32, i32
  }
  func.func @transform_6(%arg0: i32) -> (i32, i32) {
    %c0_i32 = arith.constant 0 : i32
    %c0_i32_0 = arith.constant 0 : i32
    %c0_i32_1 = arith.constant 0 : i32
    return %c0_i32, %c0_i32_0 : i32, i32
  }
}

</mosaic_0001>

<llo_original>
// kernel: tpu_custom_call.1
$region0: #{tpu_custom_call.1}
  #allocation0 [shape = 'u32[]', space=smem, size = 0x4, offset = 0x4, fixed_abs, tag = 'smem constant byte address 0x4 - core index']
  #allocation1 [shape = 'u32[72,128]{1,0:T(1,128)}', space=vmem, size = 0x9000, scoped, tag = 'internal scratch']
  #allocation2 [shape = 'f32[16,32]{1,0:T(8,128)}', space=vmem, size = 0x2000, scoped, tag = 'scratch operand']
  %s0 = inlined_call_operand.vmem [shape: f32[16,4], index: 0, kind: input, shape index: {}]
  %s1 = inlined_call_operand.vmem [shape: f32[4,128], index: 1, kind: input, shape index: {}]
  %s2 = inlined_call_operand.hbm [shape: f32[32,128], index: 2, kind: input, shape index: {}]
  %s3 = inlined_call_operand.vmem [shape: f32[1,128], index: 3, kind: input, shape index: {}]
  %s4 = inlined_call_operand.hbm [shape: f32[32,128], index: 4, kind: input, shape index: {}]
  %s5 = inlined_call_operand.vmem [shape: f32[1,128], index: 5, kind: input, shape index: {}]
  %s6 = inlined_call_operand.hbm [shape: f32[16,128], index: 6, kind: output, shape index: {}]
  %s7 = sld [smem:[#allocation0]]
  $region42: #{tpu_custom_call.1} parent=0
    _
  %s9 = ssub.s32 1, %s7
  %s10 = scalar_select 0, %s9, %s7
  $region1: #{tpu_custom_call.1} parent=0
    #allocation3 [shape = 'u8[16384]{0}', space=vmem, size = 0x4000, scoped, tag = 'input window, operand 2, single buffered']
    #allocation4 [shape = 's32[1]{0}', space=sflag, size = 0x4, scoped, tag = 'scoped memory for tpu_custom_call.1']
    #allocation5 [shape = 's32[1]{0}', space=sflag, size = 0x4, scoped, tag = 'scoped memory for tpu_custom_call.1']
    #allocation6 [shape = 'u8[16384]{0}', space=vmem, size = 0x4000, scoped, tag = 'input window, operand 4, single buffered']
    #allocation7 [shape = 's32[1]{0}', space=sflag, size = 0x4, scoped, tag = 'scoped memory for tpu_custom_call.1']
    #allocation8 [shape = 'u8[8192]{0}', space=vmem, size = 0x2000, scoped, tag = 'output window, operand 0, single buffered']
    %11 = vsyncpa [#allocation4], 0
    %12 = vsyncpa [#allocation7], 0
    %13 = vsyncpa [#allocation5], 0
    // Predicated region
    $region2: #{tpu_custom_call.1} parent=1 // pred_check
      _
    $region3: #{tpu_custom_call.1} parent=1 // pred_check_branch
      %15 = sbr.rel (0) target = $region5
    $region4: #{tpu_custom_call.1} parent=1 // pred_region
      _
    $region5: #{tpu_custom_call.1} parent=1 // pred_fallthru
      _
    // Predicated region
    $region6: #{tpu_custom_call.1} parent=1 // pred_check
      _
    $region7: #{tpu_custom_call.1} parent=1 // pred_check_branch
      %17 = sbr.rel (0) target = $region9
    $region8: #{tpu_custom_call.1} parent=1 // pred_region
      _
    $region9: #{tpu_custom_call.1} parent=1 // pred_fallthru
      _
    // Predicated region
    $region10: #{tpu_custom_call.1} parent=1 // pred_check
      _
    $region11: #{tpu_custom_call.1} parent=1 // pred_check_branch
      %19 = sbr.rel (0) target = $region13
    $region12: #{tpu_custom_call.1} parent=1 // pred_region
      %21 = vsyncadd [#allocation4], 0
      %s22 = sshll.u32 %s2, 4
      %s23 = int_to_ptr.hbm [resolvable:$true] %s22
      %s24 = sshll.u32 [#allocation3], 4
      %s25 = int_to_ptr.vmem [resolvable:$true] %s24
      %30 = dma.hbm_to_vmem [thread:$0]  %s23, 512, %s25, [#allocation4], 128, 128, 8
    $region13: #{tpu_custom_call.1} parent=1 // pred_fallthru
      _
    // Predicated region
    $region14: #{tpu_custom_call.1} parent=1 // pred_check
      _
    $region15: #{tpu_custom_call.1} parent=1 // pred_check_branch
      %32 = sbr.rel (0) target = $region17
    $region16: #{tpu_custom_call.1} parent=1 // pred_region
      _
    $region17: #{tpu_custom_call.1} parent=1 // pred_fallthru
      _
    // Predicated region
    $region18: #{tpu_custom_call.1} parent=1 // pred_check
      _
    $region19: #{tpu_custom_call.1} parent=1 // pred_check_branch
      %34 = sbr.rel (0) target = $region21
    $region20: #{tpu_custom_call.1} parent=1 // pred_region
      %36 = vsyncadd [#allocation7], 0
      %s37 = sshll.u32 %s4, 4
      %s38 = int_to_ptr.hbm [resolvable:$true] %s37
      %s39 = sshll.u32 [#allocation6], 4
      %s40 = int_to_ptr.vmem [resolvable:$true] %s39
      %45 = dma.hbm_to_vmem [thread:$0]  %s38, 512, %s40, [#allocation7], 128, 128, 8
    $region21: #{tpu_custom_call.1} parent=1 // pred_fallthru
      _
    // Predicated region
    $region22: #{tpu_custom_call.1} parent=1 // pred_check
      _
    $region23: #{tpu_custom_call.1} parent=1 // pred_check_branch
      %47 = sbr.rel (0) target = $region25
    $region24: #{tpu_custom_call.1} parent=1 // pred_region
      _
    $region25: #{tpu_custom_call.1} parent=1 // pred_fallthru
      _
    // Predicated region
    $region26: #{tpu_custom_call.1} parent=1 // pred_check
      _
    $region27: #{tpu_custom_call.1} parent=1 // pred_check_branch
      %49 = sbr.rel (0) target = $region29
    $region28: #{tpu_custom_call.1} parent=1 // pred_region
      %51 = dma.done [#allocation4], 512
    $region29: #{tpu_custom_call.1} parent=1 // pred_fallthru
      _
    // Predicated region
    $region30: #{tpu_custom_call.1} parent=1 // pred_check
      _
    $region31: #{tpu_custom_call.1} parent=1 // pred_check_branch
      %53 = sbr.rel (0) target = $region33
    $region32: #{tpu_custom_call.1} parent=1 // pred_region
      %55 = dma.done [#allocation7], 512
    $region33: #{tpu_custom_call.1} parent=1 // pred_fallthru
      _
    %v56 = vld [vmem:[%s0] sm:$0xff]
    %v57 = vld [vmem:[%s0 + $0x8] sm:$0xff]
    %v58 = vld [vmem:[%s1] sm:$0xf]
    %v59 = vld [vmem:[%s3] sm:$0x1]
    %v61 = vperm.slane %v59, 0
    %vm63 = vcmask 31744
    %v65 = vsel %vm63, %v56, 0
    %v68 = vsel %vm63, %v57, 0
    %vm70 = vcmask 1043456
    %v72 = vsel %vm70, %v58, 0
    %74 = vmatpush.msra.mxu0 0.0
    %75 = vmatpush.msra.mxu0 0.0
    %76 = vmatpush.msra.mxu0 0.0
    %77 = vmatpush.msra.mxu0 0.0
    %78 = vmatpush.msra.mxu0 0.0
    %79 = vmatpush.msra.mxu0 0.0
    %80 = vmatpush.msra.mxu0 0.0
    %81 = vmatpush.msra.mxu0 0.0
    %82 = vmatpush.msra.mxu0 0.0
    %83 = vmatpush.msra.mxu0 0.0
    %84 = vmatpush.msra.mxu0 0.0
    %85 = vmatpush.msra.mxu0 0.0
    %86 = vmatpush.msra.mxu0 0.0
    %87 = vmatpush.msra.mxu0 0.0
    %88 = vmatpush.msra.mxu0 0.0
    %89 = vmatpush.msra.mxu0 %v72
    %90 = vmatmul.f32.gmra.mxu0 %v65
    %v91 = vpop.f32.mrf.mxu0
    %v92 = vadd.f32 %v61, %v91
    %93 = vmatmul.f32.gmra.mxu0 %v68
    %v94 = vpop.f32.mrf.mxu0
    %v95 = vadd.f32 %v61, %v94
    %96 = vdwg.mxu0
    %v97 = vld [vmem:[#allocation3] sm:$0xff]
    %v98 = vld [vmem:[#allocation3 + $0x8] sm:$0xff]
    %v99 = vld [vmem:[#allocation3 + $0x10] sm:$0xff]
    %v100 = vld [vmem:[#allocation3 + $0x18] sm:$0xff]
    %vm101 = vcmask 261120
    %v103 = vsel %vm101, 0.0, 0
    %105 = vmatpush.msra.mxu0 0.0
    %106 = vmatpush.msra.mxu0 0.0
    %107 = vmatpush.msra.mxu0 0.0
    %108 = vmatpush.msra.mxu0 0.0
    %109 = vmatpush.msra.mxu0 0.0
    %110 = vmatpush.msra.mxu0 0.0
    %111 = vmatpush.msra.mxu0 0.0
    %112 = vmatpush.msra.mxu0 0.0
    %113 = vmatpush.msra.mxu0 0.0
    %114 = vmatpush.msra.mxu0 0.0
    %115 = vmatpush.msra.mxu0 0.0
    %116 = vmatpush.msra.mxu0 0.0
    %117 = vmatpush.msra.mxu0 %v100
    %118 = vmatpush.msra.mxu0 %v99
    %119 = vmatpush.msra.mxu0 %v98
    %120 = vmatpush.msra.mxu0 %v97
    %121 = vmatmul.f32.gmra.mxu0 %v103
    %v122 = vpop.f32.mrf.mxu0
    %v123 = vadd.f32 0.0, %v122
    %124 = vdwg.mxu0
    %v125 = vadd.f32 %v92, %v123
    %v126 = vxor.u32 %v125, 2147483648
    %v127 = vmul.f32 %v126, 1.442695
    %v128 = vpow.pop %v127
    %v129 = vadd.f32 %v128, 1.0
    %v130 = vrcp.pop %v129
    %v131 = vmul.f32 %v129, %v130
    %v132 = vsub.f32 1.0, %v131
    %v133 = vmul.f32 %v130, %v132
    %v134 = vadd.f32 %v130, %v133
    %vm135 = vweird.f32 %v129
    %vm136 = vweird.f32 %v130
    %vm137 = vmor %vm135, %vm136
    %v138 = vsel %vm137, %v130, %v134
    %v139 = vand.u32 2147483647, %v129
    %vm140 = vcmp.eq.f32.partialorder %v139, 8.507059e+37
    %v141 = vand.u32 %v129, 2147483648
    %v142 = vor.u32 1.1754944e-38, %v141
    %v143 = vsel %vm140, %v142, %v138
    %v144 = vmul.f32 1.0, %v143
    %v145 = vtanh.pop %v125
    %v146 = vmul.f32 %v144, 0.0
    %148 = vrot.lane.b32.xlu0 %v145, 32
    %v149 = vpop.permute.xlu0 %148
    %v151 = vmul.f32 %v144, %v149
    %153 = vrot.lane.b32.xlu0 %v151, 32
    %v154 = vpop.permute.xlu0 %153
    %v156 = vadd.f32 %v146, %v154
    %v157 = vtanh.pop %v156
    %159 = vrot.lane.b32.xlu0 %v157, 32
    %v160 = vpop.permute.xlu0 %159
    %v162 = vmul.f32 %v144, %v160
    %164 = vrot.lane.b32.xlu0 %v162, 64
    %v165 = vpop.permute.xlu0 %164
    %vm167 = vcmask 254976
    %168 = vst.msk [vmem:[#allocation2] sm:$0x3] %vm167, %v165
    %v169 = vsel %vm101, %v165, 0
    %171 = vmatpush.msra.mxu0 0.0
    %172 = vmatpush.msra.mxu0 0.0
    %173 = vmatpush.msra.mxu0 0.0
    %174 = vmatpush.msra.mxu0 0.0
    %175 = vmatpush.msra.mxu0 0.0
    %176 = vmatpush.msra.mxu0 0.0
    %177 = vmatpush.msra.mxu0 0.0
    %178 = vmatpush.msra.mxu0 0.0
    %179 = vmatpush.msra.mxu0 0.0
    %180 = vmatpush.msra.mxu0 0.0
    %181 = vmatpush.msra.mxu0 0.0
    %182 = vmatpush.msra.mxu0 0.0
    %183 = vmatpush.msra.mxu0 %v100
    %184 = vmatpush.msra.mxu0 %v99
    %185 = vmatpush.msra.mxu0 %v98
    %186 = vmatpush.msra.mxu0 %v97
    %187 = vmatmul.f32.gmra.mxu0 %v169
    %v188 = vpop.f32.mrf.mxu0
    %v189 = vadd.f32 0.0, %v188
    %190 = vdwg.mxu0
    %v192 = vrot.slane %v189, 6
    %v194 = vadd.f32 %v92, %v192
    %v195 = vxor.u32 %v194, 2147483648
    %v196 = vmul.f32 %v195, 1.442695
    %v197 = vpow.pop %v196
    %v198 = vadd.f32 %v197, 1.0
    %v199 = vrcp.pop %v198
    %v200 = vmul.f32 %v198, %v199
    %v201 = vsub.f32 1.0, %v200
    %v202 = vmul.f32 %v199, %v201
    %v203 = vadd.f32 %v199, %v202
    %vm204 = vweird.f32 %v198
    %vm205 = vweird.f32 %v199
    %vm206 = vmor %vm204, %vm205
    %v207 = vsel %vm206, %v199, %v203
    %v208 = vand.u32 2147483647, %v198
    %vm209 = vcmp.eq.f32.partialorder %v208, 8.507059e+37
    %v210 = vand.u32 %v198, 2147483648
    %v211 = vor.u32 1.1754944e-38, %v210
    %v212 = vsel %vm209, %v211, %v207
    %v213 = vmul.f32 1.0, %v212
    %v214 = vtanh.pop %v194
    %v216 = vrot.slane %v156, 6
    %v218 = vmul.f32 %v213, %v216
    %220 = vrot.lane.b32.xlu0 %v214, 32
    %v221 = vpop.permute.xlu0 %220
    %v223 = vmul.f32 %v213, %v221
    %225 = vrot.lane.b32.xlu0 %v223, 32
    %v226 = vpop.permute.xlu0 %225
    %v228 = vadd.f32 %v218, %v226
    %v229 = vtanh.pop %v228
    %231 = vrot.lane.b32.xlu0 %v229, 32
    %v232 = vpop.permute.xlu0 %231
    %v234 = vmul.f32 %v213, %v232
    %236 = vrot.lane.b32.xlu0 %v234, 64
    %v237 = vpop.permute.xlu0 %236
    %vm239 = vcmask 257026
    %240 = vst.msk [vmem:[#allocation2] sm:$0xc] %vm239, %v237
    %v241 = vrot.slane %v234, 2
    %242 = vrot.lane.b32.xlu0 %v241, 64
    %v243 = vpop.permute.xlu0 %242
    %v244 = vsel %vm101, %v243, 0
    %246 = vmatpush.msra.mxu0 0.0
    %247 = vmatpush.msra.mxu0 0.0
    %248 = vmatpush.msra.mxu0 0.0
    %249 = vmatpush.msra.mxu0 0.0
    %250 = vmatpush.msra.mxu0 0.0
    %251 = vmatpush.msra.mxu0 0.0
    %252 = vmatpush.msra.mxu0 0.0
    %253 = vmatpush.msra.mxu0 0.0
    %254 = vmatpush.msra.mxu0 0.0
    %255 = vmatpush.msra.mxu0 0.0
    %256 = vmatpush.msra.mxu0 0.0
    %257 = vmatpush.msra.mxu0 0.0
    %258 = vmatpush.msra.mxu0 %v100
    %259 = vmatpush.msra.mxu0 %v99
    %260 = vmatpush.msra.mxu0 %v98
    %261 = vmatpush.msra.mxu0 %v97
    %262 = vmatmul.f32.gmra.mxu0 %v244
    %v263 = vpop.f32.mrf.mxu0
    %v264 = vadd.f32 0.0, %v263
    %265 = vdwg.mxu0
    %v267 = vrot.slane %v264, 4
    %v269 = vadd.f32 %v92, %v267
    %v270 = vxor.u32 %v269, 2147483648
    %v271 = vmul.f32 %v270, 1.442695
    %v272 = vpow.pop %v271
    %v273 = vadd.f32 %v272, 1.0
    %v274 = vrcp.pop %v273
    %v275 = vmul.f32 %v273, %v274
    %v276 = vsub.f32 1.0, %v275
    %v277 = vmul.f32 %v274, %v276
    %v278 = vadd.f32 %v274, %v277
    %vm279 = vweird.f32 %v273
    %vm280 = vweird.f32 %v274
    %vm281 = vmor %vm279, %vm280
    %v282 = vsel %vm281, %v274, %v278
    %v283 = vand.u32 2147483647, %v273
    %vm284 = vcmp.eq.f32.partialorder %v283, 8.507059e+37
    %v285 = vand.u32 %v273, 2147483648
    %v286 = vor.u32 1.1754944e-38, %v285
    %v287 = vsel %vm284, %v286, %v282
    %v288 = vmul.f32 1.0, %v287
    %v289 = vtanh.pop %v269
    %v291 = vrot.slane %v228, 6
    %v293 = vmul.f32 %v288, %v291
    %295 = vrot.lane.b32.xlu0 %v289, 32
    %v296 = vpop.permute.xlu0 %295
    %v298 = vmul.f32 %v288, %v296
    %300 = vrot.lane.b32.xlu0 %v298, 32
    %v301 = vpop.permute.xlu0 %300
    %v303 = vadd.f32 %v293, %v301
    %v304 = vtanh.pop %v303
    %306 = vrot.lane.b32.xlu0 %v304, 32
    %v307 = vpop.permute.xlu0 %306
    %v309 = vmul.f32 %v288, %v307
    %311 = vrot.lane.b32.xlu0 %v309, 64
    %v312 = vpop.permute.xlu0 %311
    %vm314 = vcmask 259076
    %315 = vst.msk [vmem:[#allocation2] sm:$0x30] %vm314, %v312
    %v316 = vrot.slane %v309, 4
    %317 = vrot.lane.b32.xlu0 %v316, 64
    %v318 = vpop.permute.xlu0 %317
    %v319 = vsel %vm101, %v318, 0
    %321 = vmatpush.msra.mxu0 0.0
    %322 = vmatpush.msra.mxu0 0.0
    %323 = vmatpush.msra.mxu0 0.0
    %324 = vmatpush.msra.mxu0 0.0
    %325 = vmatpush.msra.mxu0 0.0
    %326 = vmatpush.msra.mxu0 0.0
    %327 = vmatpush.msra.mxu0 0.0
    %328 = vmatpush.msra.mxu0 0.0
    %329 = vmatpush.msra.mxu0 0.0
    %330 = vmatpush.msra.mxu0 0.0
    %331 = vmatpush.msra.mxu0 0.0
    %332 = vmatpush.msra.mxu0 0.0
    %333 = vmatpush.msra.mxu0 %v100
    %334 = vmatpush.msra.mxu0 %v99
    %335 = vmatpush.msra.mxu0 %v98
    %336 = vmatpush.msra.mxu0 %v97
    %337 = vmatmul.f32.gmra.mxu0 %v319
    %v338 = vpop.f32.mrf.mxu0
    %v339 = vadd.f32 0.0, %v338
    %340 = vdwg.mxu0
    %v342 = vrot.slane %v339, 2
    %v344 = vadd.f32 %v92, %v342
    %v345 = vxor.u32 %v344, 2147483648
    %v346 = vmul.f32 %v345, 1.442695
    %v347 = vpow.pop %v346
    %v348 = vadd.f32 %v347, 1.0
    %v349 = vrcp.pop %v348
    %v350 = vmul.f32 %v348, %v349
    %v351 = vsub.f32 1.0, %v350
    %v352 = vmul.f32 %v349, %v351
    %v353 = vadd.f32 %v349, %v352
    %vm354 = vweird.f32 %v348
    %vm355 = vweird.f32 %v349
    %vm356 = vmor %vm354, %vm355
    %v357 = vsel %vm356, %v349, %v353
    %v358 = vand.u32 2147483647, %v348
    %vm359 = vcmp.eq.f32.partialorder %v358, 8.507059e+37
    %v360 = vand.u32 %v348, 2147483648
    %v361 = vor.u32 1.1754944e-38, %v360
    %v362 = vsel %vm359, %v361, %v357
    %v363 = vmul.f32 1.0, %v362
    %v364 = vtanh.pop %v344
    %v366 = vrot.slane %v303, 6
    %v368 = vmul.f32 %v363, %v366
    %370 = vrot.lane.b32.xlu0 %v364, 32
    %v371 = vpop.permute.xlu0 %370
    %v373 = vmul.f32 %v363, %v371
    %375 = vrot.lane.b32.xlu0 %v373, 32
    %v376 = vpop.permute.xlu0 %375
    %v378 = vadd.f32 %v368, %v376
    %v379 = vtanh.pop %v378
    %381 = vrot.lane.b32.xlu0 %v379, 32
    %v382 = vpop.permute.xlu0 %381
    %v384 = vmul.f32 %v363, %v382
    %386 = vrot.lane.b32.xlu0 %v384, 64
    %v387 = vpop.permute.xlu0 %386
    %vm389 = vcmask 261126
    %390 = vst.msk [vmem:[#allocation2] sm:$0xc0] %vm389, %v387
    %v391 = vrot.slane %v384, 6
    %392 = vrot.lane.b32.xlu0 %v391, 64
    %v393 = vpop.permute.xlu0 %392
    %v394 = vsel %vm101, %v393, 0
    %396 = vmatpush.msra.mxu0 0.0
    %397 = vmatpush.msra.mxu0 0.0
    %398 = vmatpush.msra.mxu0 0.0
    %399 = vmatpush.msra.mxu0 0.0
    %400 = vmatpush.msra.mxu0 0.0
    %401 = vmatpush.msra.mxu0 0.0
    %402 = vmatpush.msra.mxu0 0.0
    %403 = vmatpush.msra.mxu0 0.0
    %404 = vmatpush.msra.mxu0 0.0
    %405 = vmatpush.msra.mxu0 0.0
    %406 = vmatpush.msra.mxu0 0.0
    %407 = vmatpush.msra.mxu0 0.0
    %408 = vmatpush.msra.mxu0 %v100
    %409 = vmatpush.msra.mxu0 %v99
    %410 = vmatpush.msra.mxu0 %v98
    %411 = vmatpush.msra.mxu0 %v97
    %412 = vmatmul.f32.gmra.mxu0 %v394
    %v413 = vpop.f32.mrf.mxu0
    %v414 = vadd.f32 0.0, %v413
    %415 = vdwg.mxu0
    %v416 = vadd.f32 %v95, %v414
    %v417 = vxor.u32 %v416, 2147483648
    %v418 = vmul.f32 %v417, 1.442695
    %v419 = vpow.pop %v418
    %v420 = vadd.f32 %v419, 1.0
    %v421 = vrcp.pop %v420
    %v422 = vmul.f32 %v420, %v421
    %v423 = vsub.f32 1.0, %v422
    %v424 = vmul.f32 %v421, %v423
    %v425 = vadd.f32 %v421, %v424
    %vm426 = vweird.f32 %v420
    %vm427 = vweird.f32 %v421
    %vm428 = vmor %vm426, %vm427
    %v429 = vsel %vm428, %v421, %v425
    %v430 = vand.u32 2147483647, %v420
    %vm431 = vcmp.eq.f32.partialorder %v430, 8.507059e+37
    %v432 = vand.u32 %v420, 2147483648
    %v433 = vor.u32 1.1754944e-38, %v432
    %v434 = vsel %vm431, %v433, %v429
    %v435 = vmul.f32 1.0, %v434
    %v436 = vtanh.pop %v416
    %v438 = vrot.slane %v378, 6
    %v440 = vmul.f32 %v435, %v438
    %442 = vrot.lane.b32.xlu0 %v436, 32
    %v443 = vpop.permute.xlu0 %442
    %v445 = vmul.f32 %v435, %v443
    %447 = vrot.lane.b32.xlu0 %v445, 32
    %v448 = vpop.permute.xlu0 %447
    %v450 = vadd.f32 %v440, %v448
    %v451 = vtanh.pop %v450
    %453 = vrot.lane.b32.xlu0 %v451, 32
    %v454 = vpop.permute.xlu0 %453
    %v456 = vmul.f32 %v435, %v454
    %458 = vrot.lane.b32.xlu0 %v456, 64
    %v459 = vpop.permute.xlu0 %458
    %461 = vst.msk [vmem:[#allocation2 + $0x8] sm:$0x3] %vm167, %v459
    %v462 = vsel %vm101, %v459, 0
    %464 = vmatpush.msra.mxu0 0.0
    %465 = vmatpush.msra.mxu0 0.0
    %466 = vmatpush.msra.mxu0 0.0
    %467 = vmatpush.msra.mxu0 0.0
    %468 = vmatpush.msra.mxu0 0.0
    %469 = vmatpush.msra.mxu0 0.0
    %470 = vmatpush.msra.mxu0 0.0
    %471 = vmatpush.msra.mxu0 0.0
    %472 = vmatpush.msra.mxu0 0.0
    %473 = vmatpush.msra.mxu0 0.0
    %474 = vmatpush.msra.mxu0 0.0
    %475 = vmatpush.msra.mxu0 0.0
    %476 = vmatpush.msra.mxu0 %v100
    %477 = vmatpush.msra.mxu0 %v99
    %478 = vmatpush.msra.mxu0 %v98
    %479 = vmatpush.msra.mxu0 %v97
    %480 = vmatmul.f32.gmra.mxu0 %v462
    %v481 = vpop.f32.mrf.mxu0
    %v482 = vadd.f32 0.0, %v481
    %483 = vdwg.mxu0
    %v485 = vrot.slane %v482, 6
    %v487 = vadd.f32 %v95, %v485
    %v488 = vxor.u32 %v487, 2147483648
    %v489 = vmul.f32 %v488, 1.442695
    %v490 = vpow.pop %v489
    %v491 = vadd.f32 %v490, 1.0
    %v492 = vrcp.pop %v491
    %v493 = vmul.f32 %v491, %v492
    %v494 = vsub.f32 1.0, %v493
    %v495 = vmul.f32 %v492, %v494
    %v496 = vadd.f32 %v492, %v495
    %vm497 = vweird.f32 %v491
    %vm498 = vweird.f32 %v492
    %vm499 = vmor %vm497, %vm498
    %v500 = vsel %vm499, %v492, %v496
    %v501 = vand.u32 2147483647, %v491
    %vm502 = vcmp.eq.f32.partialorder %v501, 8.507059e+37
    %v503 = vand.u32 %v491, 2147483648
    %v504 = vor.u32 1.1754944e-38, %v503
    %v505 = vsel %vm502, %v504, %v500
    %v506 = vmul.f32 1.0, %v505
    %v507 = vtanh.pop %v487
    %v509 = vrot.slane %v450, 6
    %v511 = vmul.f32 %v506, %v509
    %513 = vrot.lane.b32.xlu0 %v507, 32
    %v514 = vpop.permute.xlu0 %513
    %v516 = vmul.f32 %v506, %v514
    %518 = vrot.lane.b32.xlu0 %v516, 32
    %v519 = vpop.permute.xlu0 %518
    %v521 = vadd.f32 %v511, %v519
    %v522 = vtanh.pop %v521
    %524 = vrot.lane.b32.xlu0 %v522, 32
    %v525 = vpop.permute.xlu0 %524
    %v527 = vmul.f32 %v506, %v525
    %529 = vrot.lane.b32.xlu0 %v527, 64
    %v530 = vpop.permute.xlu0 %529
    %532 = vst.msk [vmem:[#allocation2 + $0x8] sm:$0xc] %vm239, %v530
    %v533 = vrot.slane %v527, 2
    %534 = vrot.lane.b32.xlu0 %v533, 64
    %v535 = vpop.permute.xlu0 %534
    %v536 = vsel %vm101, %v535, 0
    %538 = vmatpush.msra.mxu0 0.0
    %539 = vmatpush.msra.mxu0 0.0
    %540 = vmatpush.msra.mxu0 0.0
    %541 = vmatpush.msra.mxu0 0.0
    %542 = vmatpush.msra.mxu0 0.0
    %543 = vmatpush.msra.mxu0 0.0
    %544 = vmatpush.msra.mxu0 0.0
    %545 = vmatpush.msra.mxu0 0.0
    %546 = vmatpush.msra.mxu0 0.0
    %547 = vmatpush.msra.mxu0 0.0
    %548 = vmatpush.msra.mxu0 0.0
    %549 = vmatpush.msra.mxu0 0.0
    %550 = vmatpush.msra.mxu0 %v100
    %551 = vmatpush.msra.mxu0 %v99
    %552 = vmatpush.msra.mxu0 %v98
    %553 = vmatpush.msra.mxu0 %v97
    %554 = vmatmul.f32.gmra.mxu0 %v536
    %v555 = vpop.f32.mrf.mxu0
    %v556 = vadd.f32 0.0, %v555
    %557 = vdwg.mxu0
    %v559 = vrot.slane %v556, 4
    %v561 = vadd.f32 %v95, %v559
    %v562 = vxor.u32 %v561, 2147483648
    %v563 = vmul.f32 %v562, 1.442695
    %v564 = vpow.pop %v563
    %v565 = vadd.f32 %v564, 1.0
    %v566 = vrcp.pop %v565
    %v567 = vmul.f32 %v565, %v566
    %v568 = vsub.f32 1.0, %v567
    %v569 = vmul.f32 %v566, %v568
    %v570 = vadd.f32 %v566, %v569
    %vm571 = vweird.f32 %v565
    %vm572 = vweird.f32 %v566
    %vm573 = vmor %vm571, %vm572
    %v574 = vsel %vm573, %v566, %v570
    %v575 = vand.u32 2147483647, %v565
    %vm576 = vcmp.eq.f32.partialorder %v575, 8.507059e+37
    %v577 = vand.u32 %v565, 2147483648
    %v578 = vor.u32 1.1754944e-38, %v577
    %v579 = vsel %vm576, %v578, %v574
    %v580 = vmul.f32 1.0, %v579
    %v581 = vtanh.pop %v561
    %v583 = vrot.slane %v521, 6
    %v585 = vmul.f32 %v580, %v583
    %587 = vrot.lane.b32.xlu0 %v581, 32
    %v588 = vpop.permute.xlu0 %587
    %v590 = vmul.f32 %v580, %v588
    %592 = vrot.lane.b32.xlu0 %v590, 32
    %v593 = vpop.permute.xlu0 %592
    %v595 = vadd.f32 %v585, %v593
    %v596 = vtanh.pop %v595
    %598 = vrot.lane.b32.xlu0 %v596, 32
    %v599 = vpop.permute.xlu0 %598
    %v601 = vmul.f32 %v580, %v599
    %603 = vrot.lane.b32.xlu0 %v601, 64
    %v604 = vpop.permute.xlu0 %603
    %606 = vst.msk [vmem:[#allocation2 + $0x8] sm:$0x30] %vm314, %v604
    %v607 = vrot.slane %v601, 4
    %608 = vrot.lane.b32.xlu0 %v607, 64
    %v609 = vpop.permute.xlu0 %608
    %v610 = vsel %vm101, %v609, 0
    %612 = vmatpush.msra.mxu0 0.0
    %613 = vmatpush.msra.mxu0 0.0
    %614 = vmatpush.msra.mxu0 0.0
    %615 = vmatpush.msra.mxu0 0.0
    %616 = vmatpush.msra.mxu0 0.0
    %617 = vmatpush.msra.mxu0 0.0
    %618 = vmatpush.msra.mxu0 0.0
    %619 = vmatpush.msra.mxu0 0.0
    %620 = vmatpush.msra.mxu0 0.0
    %621 = vmatpush.msra.mxu0 0.0
    %622 = vmatpush.msra.mxu0 0.0
    %623 = vmatpush.msra.mxu0 0.0
    %624 = vmatpush.msra.mxu0 %v100
    %625 = vmatpush.msra.mxu0 %v99
    %626 = vmatpush.msra.mxu0 %v98
    %627 = vmatpush.msra.mxu0 %v97
    %628 = vmatmul.f32.gmra.mxu0 %v610
    %v629 = vpop.f32.mrf.mxu0
    %v630 = vadd.f32 0.0, %v629
    %631 = vdwg.mxu0
    %v633 = vrot.slane %v630, 2
    %v635 = vadd.f32 %v95, %v633
    %v636 = vxor.u32 %v635, 2147483648
    %v637 = vmul.f32 %v636, 1.442695
    %v638 = vpow.pop %v637
    %v639 = vadd.f32 %v638, 1.0
    %v640 = vrcp.pop %v639
    %v641 = vmul.f32 %v639, %v640
    %v642 = vsub.f32 1.0, %v641
    %v643 = vmul.f32 %v640, %v642
    %v644 = vadd.f32 %v640, %v643
    %vm645 = vweird.f32 %v639
    %vm646 = vweird.f32 %v640
    %vm647 = vmor %vm645, %vm646
    %v648 = vsel %vm647, %v640, %v644
    %v649 = vand.u32 2147483647, %v639
    %vm650 = vcmp.eq.f32.partialorder %v649, 8.507059e+37
    %v651 = vand.u32 %v639, 2147483648
    %v652 = vor.u32 1.1754944e-38, %v651
    %v653 = vsel %vm650, %v652, %v648
    %v654 = vmul.f32 1.0, %v653
    %v655 = vtanh.pop %v635
    %v657 = vrot.slane %v595, 6
    %v659 = vmul.f32 %v654, %v657
    %661 = vrot.lane.b32.xlu0 %v655, 32
    %v662 = vpop.permute.xlu0 %661
    %v664 = vmul.f32 %v654, %v662
    %666 = vrot.lane.b32.xlu0 %v664, 32
    %v667 = vpop.permute.xlu0 %666
    %v669 = vadd.f32 %v659, %v667
    %v670 = vtanh.pop %v669
    %672 = vrot.lane.b32.xlu0 %v670, 32
    %v673 = vpop.permute.xlu0 %672
    %v675 = vmul.f32 %v654, %v673
    %677 = vrot.lane.b32.xlu0 %v675, 64
    %v678 = vpop.permute.xlu0 %677
    %680 = vst.msk [vmem:[#allocation2 + $0x8] sm:$0xc0] %vm389, %v678
    %v681 = vld [vmem:[#allocation2] sm:$0xff]
    %v682 = vld [vmem:[#allocation2 + $0x8] sm:$0xff]
    %v683 = vld [vmem:[#allocation6] sm:$0xff]
    %v684 = vld [vmem:[#allocation6 + $0x8] sm:$0xff]
    %v685 = vld [vmem:[#allocation6 + $0x10] sm:$0xff]
    %v686 = vld [vmem:[#allocation6 + $0x18] sm:$0xff]
    %v687 = vld [vmem:[%s5] sm:$0x1]
    %v689 = vperm.slane %v687, 0
    %v692 = vsel %vm101, %v681, 0
    %v695 = vsel %vm101, %v682, 0
    %697 = vmatpush.msra.mxu0 0.0
    %698 = vmatpush.msra.mxu0 0.0
    %699 = vmatpush.msra.mxu0 0.0
    %700 = vmatpush.msra.mxu0 0.0
    %701 = vmatpush.msra.mxu0 0.0
    %702 = vmatpush.msra.mxu0 0.0
    %703 = vmatpush.msra.mxu0 0.0
    %704 = vmatpush.msra.mxu0 0.0
    %705 = vmatpush.msra.mxu0 0.0
    %706 = vmatpush.msra.mxu0 0.0
    %707 = vmatpush.msra.mxu0 0.0
    %708 = vmatpush.msra.mxu0 0.0
    %709 = vmatpush.msra.mxu0 %v686
    %710 = vmatpush.msra.mxu0 %v685
    %711 = vmatpush.msra.mxu0 %v684
    %712 = vmatpush.msra.mxu0 %v683
    %713 = vmatmul.f32.gmra.mxu0 %v692
    %v714 = vpop.f32.mrf.mxu0
    %v715 = vadd.f32 %v689, %v714
    %716 = vmatmul.f32.gmra.mxu0 %v695
    %v717 = vpop.f32.mrf.mxu0
    %v718 = vadd.f32 %v689, %v717
    %719 = vdwg.mxu0
    %720 = vst [vmem:[#allocation8] sm:$0xff] %v715
    %721 = vst [vmem:[#allocation8 + $0x8] sm:$0xff] %v718
    // Predicated region
    $region34: #{tpu_custom_call.1} parent=1 // pred_check
      _
    $region35: #{tpu_custom_call.1} parent=1 // pred_check_branch
      %723 = sbr.rel (0) target = $region37
    $region36: #{tpu_custom_call.1} parent=1 // pred_region
      %725 = vsyncadd [#allocation5], 0
      %s726 = sshll.u32 [#allocation8], 4
      %s727 = int_to_ptr.vmem [resolvable:$true] %s726
      %s728 = sshll.u32 %s6, 4
      %s729 = int_to_ptr.hbm [resolvable:$true] %s728
      %734 = dma.vmem_to_hbm [thread:$0]  %s727, 256, %s729, [#allocation5], 128, 128, 8
    $region37: #{tpu_custom_call.1} parent=1 // pred_fallthru
      _
    // Predicated region
    $region38: #{tpu_custom_call.1} parent=1 // pred_check
      _
    $region39: #{tpu_custom_call.1} parent=1 // pred_check_branch
      %736 = sbr.rel (0) target = $region41
    $region40: #{tpu_custom_call.1} parent=1 // pred_region
      %738 = dma.done [#allocation5], 256
    $region41: #{tpu_custom_call.1} parent=1 // pred_fallthru
      _
    %739 = vsyncpa [#allocation4], 1
    %740 = vsyncpa [#allocation7], 1
    %741 = vsyncpa [#allocation5], 1

</llo_original>
